<compile_context>
chip_gen: v5e
topology: v5e:2x2
jax: 0.10.0
libtpu: 0.0.40
codegen_flags: <defaults>
</compile_context>

<pallas_src>
import numpy as np
import jax
import jax.numpy as jnp
from jax.experimental import pallas as pl
from jax.experimental.pallas import tpu as pltpu

_TARGET_TILE_BYTES = 4 * 1024 * 1024   # ~4 MiB per buffer per tile (dtype-independent)


# --------------------------------------------------------------------------------------
# Pallas kernel: identity copy of one lane-dense tile
# --------------------------------------------------------------------------------------
def _copy_kernel(x_ref, o_ref):
    o_ref[...] = x_ref[...]


# --------------------------------------------------------------------------------------
# Shape bookkeeping: exactly the PyTorch module's forward()
# --------------------------------------------------------------------------------------
def _flatten_shape(shape, start_dim, end_dim):
    nd = len(shape)
    end_dim = end_dim if end_dim >= 0 else nd + end_dim
    shape_left = tuple(shape[:start_dim])
    shape_right = tuple(shape[end_dim + 1:])
    if end_dim >= start_dim:
        shape_middle = int(np.prod(shape[start_dim:end_dim + 1], dtype=np.int64))
    else:
        shape_middle = 1
    return shape_left + (shape_middle,) + shape_right


def _pick_lane_width(n):
    """Largest multiple of 128 (capped) that divides n -> no element padding needed."""
    for lanes in (2048, 1024, 512, 384, 256, 128):
        if n % lanes == 0:
            return lanes, False
    return 128, True   # rare fallback: pad up to the next multiple of 128


# --------------------------------------------------------------------------------------
# Wrapper: PyTorch Flatten semantics, data movement through the Pallas copy
# --------------------------------------------------------------------------------------
def flatten(x, start_dim=1, end_dim=-1, *, tile_bytes=_TARGET_TILE_BYTES):
    out_shape = _flatten_shape(x.shape, start_dim, end_dim)
    n = int(np.prod(x.shape, dtype=np.int64))
    if n == 0:
        return jnp.reshape(x, out_shape)

    itemsize = int(np.dtype(x.dtype).itemsize)

    # Present the contiguous data as a lane-dense 2D slab with no padding when possible.
    lanes, needs_pad = _pick_lane_width(n)
    flat = x.reshape(-1)                                # metadata-only
    if needs_pad:
        n_pad = pl.cdiv(n, lanes) * lanes
        flat = jnp.pad(flat, (0, n_pad - n))            # only when n % 128 != 0
    else:
        n_pad = n
    rows = n_pad // lanes
    x2d = flat.reshape(rows, lanes)                     # metadata-only

    # Dtype-aware row tile: keep each tile ~tile_bytes; rows per tile a multiple of 8.
    tm = max(8, (tile_bytes // (lanes * itemsize)) // 8 * 8)
    if rows <= tm:
        tm = rows          # single tile == full array (no (8,128) divisibility needed)
    n_tiles = pl.cdiv(rows, tm)                         # ragged last tile is masked

    out2d = pl.pallas_call(
        _copy_kernel,
        out_shape=jax.ShapeDtypeStruct((rows, lanes), x.dtype),
        grid=(n_tiles,),
        in_specs=[pl.BlockSpec((tm, lanes), lambda i: (i, 0))],
        out_specs=pl.BlockSpec((tm, lanes), lambda i: (i, 0)),
        compiler_params=pltpu.CompilerParams(
            dimension_semantics=("parallel",),
            vmem_limit_bytes=48 << 20,
        ),
        cost_estimate=pl.CostEstimate(
            flops=0, transcendentals=0, bytes_accessed=2 * n_pad * itemsize),
    )(x2d)

    out_flat = out2d.reshape(-1)
    if needs_pad:
        out_flat = out_flat[:n]
    return out_flat.reshape(out_shape)                  # metadata-only when no pad


# --------------------------------------------------------------------------------------
# Pure-JAX reference (same shape arithmetic, jnp.reshape)
# --------------------------------------------------------------------------------------
def ref_flatten(x, start_dim=1, end_dim=-1):
    return jnp.reshape(x, _flatten_shape(x.shape, start_dim, end_dim))


# --------------------------------------------------------------------------------------
if __name__ == "__main__":
    key = jax.random.PRNGKey(0)
    k1, k2, k3 = jax.random.split(key, 3)

    # Module defaults: start_dim=1, end_dim=-1 on a (batch, C, H, W) tensor.
    x = jax.random.normal(k1, (2, 4, 16, 16), jnp.float32)
    out = jax.block_until_ready(flatten(x, 1, -1))
    assert out.shape == (2, 4 * 16 * 16), out.shape
    np.testing.assert_array_equal(np.asarray(out), np.asarray(ref_flatten(x, 1, -1)))

    # Non-default dims: flatten spatial dims only.
    out2 = jax.block_until_ready(flatten(x, 2, 3))
    assert out2.shape == (2, 4, 16 * 16), out2.shape
    np.testing.assert_array_equal(np.asarray(out2), np.asarray(ref_flatten(x, 2, 3)))

    # Ragged element count (n % 128 != 0): exercises the pad fallback path.
    z = jax.random.normal(k2, (3, 5, 7, 11), jnp.float32)
    out3 = jax.block_until_ready(flatten(z, 1, -1))
    assert out3.shape == (3, 5 * 7 * 11), out3.shape
    np.testing.assert_array_equal(np.asarray(out3), np.asarray(ref_flatten(z, 1, -1)))

    # Larger input; small tile_bytes forces a multi-tile grid with a masked ragged
    # last block (validates the no-row-padding path and "parallel" sharding).
    y = jax.random.normal(k3, (8, 16, 64, 128), jnp.float32)   # 1,048,576 elements
    out4 = jax.block_until_ready(flatten(y, 1, -1, tile_bytes=192 * 1024))
    assert out4.shape == (8, 16 * 64 * 128), out4.shape
    np.testing.assert_array_equal(np.asarray(out4), np.asarray(ref_flatten(y, 1, -1)))

    # Default (4 MiB) tiles on the larger input as well.
    out5 = jax.block_until_ready(flatten(y, 1, -1))
    np.testing.assert_array_equal(np.asarray(out5), np.asarray(ref_flatten(y, 1, -1)))

    print("KERNEL_OK")
</pallas_src>

<mosaic_0001>
module attributes {stable_mosaic.version = 11 : i64} {
  func.func @_copy_kernel(%arg0: i32, %arg1: memref<1x2048xf32, #tpu.memory_space<vmem>>, %arg2: memref<1x2048xf32, #tpu.memory_space<vmem>>) attributes {dimension_semantics = [#tpu.dimension_semantics<parallel>], iteration_bounds = array<i64: 1>, scalar_prefetch = 0 : i64, scratch_operands = 0 : i64, tpu.core_type = #tpu.core_type<tc>, window_params = [{transform_indices = @transform_0, window_bounds = array<i64: 1, 2048>}, {transform_indices = @transform_1, window_bounds = array<i64: 1, 2048>}]} {
    %c0 = arith.constant 0 : index
    %c0_0 = arith.constant 0 : index
    %0 = vector.load %arg1[%c0, %c0_0] : memref<1x2048xf32, #tpu.memory_space<vmem>>, vector<1x2048xf32>
    %c0_1 = arith.constant 0 : index
    %c0_2 = arith.constant 0 : index
    %1 = vector.load %arg2[%c0_1, %c0_2] : memref<1x2048xf32, #tpu.memory_space<vmem>>, vector<1x2048xf32>
    tpu.vector_store %arg2[%c0_1, %c0_2], %0 {strides = array<i32>} : memref<1x2048xf32, #tpu.memory_space<vmem>>, vector<1x2048xf32>,
    return
  }
  func.func @transform_0(%arg0: i32) -> (i32, i32) {
    %c0_i32 = arith.constant 0 : i32
    %c0_i32_0 = arith.constant 0 : i32
    return %arg0, %c0_i32 : i32, i32
  }
  func.func @transform_1(%arg0: i32) -> (i32, i32) {
    %c0_i32 = arith.constant 0 : i32
    %c0_i32_0 = arith.constant 0 : i32
    return %arg0, %c0_i32 : i32, i32
  }
}

</mosaic_0001>

<llo_original>
// kernel: tpu_custom_call.1
$region0: #{tpu_custom_call.1}
  #allocation0 [shape = 'u32[]', space=smem, size = 0x4, offset = 0x4, fixed_abs, tag = 'smem constant byte address 0x4 - core index']
  #allocation1 [shape = 'u32[72,128]{1,0:T(1,128)}', space=vmem, size = 0x9000, scoped, tag = 'internal scratch']
  %s0 = inlined_call_operand.hbm [shape: f32[1,2048], index: 0, kind: input, shape index: {}]
  %s1 = inlined_call_operand.hbm [shape: f32[1,2048], index: 1, kind: output, shape index: {}]
  %s2 = sld [smem:[#allocation0]]
  $region18: #{tpu_custom_call.1} parent=0
    _
  %s4 = ssub.s32 1, %s2
  %s5 = scalar_select 0, %s4, %s2
  $region1: #{tpu_custom_call.1} parent=0
    #allocation2 [shape = 'u8[8192]{0}', space=vmem, size = 0x2000, scoped, tag = 'input window, operand 0, single buffered']
    #allocation3 [shape = 's32[1]{0}', space=sflag, size = 0x4, scoped, tag = 'scoped memory for tpu_custom_call.1']
    #allocation4 [shape = 's32[1]{0}', space=sflag, size = 0x4, scoped, tag = 'scoped memory for tpu_custom_call.1']
    #allocation5 [shape = 'u8[8192]{0}', space=vmem, size = 0x2000, scoped, tag = 'output window, operand 0, single buffered']
    %6 = vsyncpa [#allocation3], 0
    %7 = vsyncpa [#allocation4], 0
    // Predicated region
    $region2: #{tpu_custom_call.1} parent=1 // pred_check
      _
    $region3: #{tpu_custom_call.1} parent=1 // pred_check_branch
      %9 = sbr.rel (0) target = $region5
    $region4: #{tpu_custom_call.1} parent=1 // pred_region
      %11 = vsyncadd [#allocation3], 0
      %s13 = sshll.u32 %s0, 4
      %s14 = int_to_ptr.hbm [resolvable:$true] %s13
      %s15 = sshll.u32 [#allocation2], 4
      %s16 = int_to_ptr.vmem [resolvable:$true] %s15
      %18 = dma.hbm_to_vmem [thread:$0]  %s14, 256, %s16, [#allocation3]
    $region5: #{tpu_custom_call.1} parent=1 // pred_fallthru
      _
    // Predicated region
    $region6: #{tpu_custom_call.1} parent=1 // pred_check
      _
    $region7: #{tpu_custom_call.1} parent=1 // pred_check_branch
      %20 = sbr.rel (0) target = $region9
    $region8: #{tpu_custom_call.1} parent=1 // pred_region
      %22 = dma.done [#allocation3], 256
    $region9: #{tpu_custom_call.1} parent=1 // pred_fallthru
      _
    %v23 = vld [vmem:[#allocation2] sm:$0xff]
    %v24 = vld [vmem:[#allocation2 + $0x8] sm:$0xff]
    %25 = vst [vmem:[#allocation5] sm:$0xff] %v23
    %26 = vst [vmem:[#allocation5 + $0x8] sm:$0xff] %v24
    // Predicated region
    $region10: #{tpu_custom_call.1} parent=1 // pred_check
      _
    $region11: #{tpu_custom_call.1} parent=1 // pred_check_branch
      %28 = sbr.rel (0) target = $region13
    $region12: #{tpu_custom_call.1} parent=1 // pred_region
      %30 = vsyncadd [#allocation4], 0
      %s32 = sshll.u32 [#allocation5], 4
      %s33 = int_to_ptr.vmem [resolvable:$true] %s32
      %s34 = sshll.u32 %s1, 4
      %s35 = int_to_ptr.hbm [resolvable:$true] %s34
      %37 = dma.vmem_to_hbm [thread:$0]  %s33, 256, %s35, [#allocation4]
    $region13: #{tpu_custom_call.1} parent=1 // pred_fallthru
      _
    // Predicated region
    $region14: #{tpu_custom_call.1} parent=1 // pred_check
      _
    $region15: #{tpu_custom_call.1} parent=1 // pred_check_branch
      %39 = sbr.rel (0) target = $region17
    $region16: #{tpu_custom_call.1} parent=1 // pred_region
      %41 = dma.done [#allocation4], 256
    $region17: #{tpu_custom_call.1} parent=1 // pred_fallthru
      _
    %42 = vsyncpa [#allocation3], 1
    %43 = vsyncpa [#allocation4], 1

</llo_original>
